<compile_context>
chip_gen: v6e
topology: v6e:2x2x1
jax: 0.10.0
libtpu: 0.0.40
codegen_flags: <defaults>
</compile_context>

<pallas_src>
import functools

import jax
import jax.numpy as jnp
from jax.experimental import pallas as pl
from jax.experimental.pallas import tpu as pltpu

THRESH = 0.3   # `thresh` in SNN.py
DECAY = 0.2    # `decay` in SNN.py


def _round_up(a, m):
    return ((a + m - 1) // m) * m


def _adaptive_avg_weights(in_size, out_size, dtype=jnp.float32):
    """(out_size, in_size) matrix W with W[i, s:e] = 1/(e-s),
    s = floor(i*in/out), e = ceil((i+1)*in/out) — PyTorch AdaptiveAvgPool windows."""
    i = jnp.arange(out_size, dtype=jnp.int32)
    start = (i * in_size) // out_size
    end = ((i + 1) * in_size + out_size - 1) // out_size
    idx = jnp.arange(in_size, dtype=jnp.int32)
    mask = (idx[None, :] >= start[:, None]) & (idx[None, :] < end[:, None])
    counts = (end - start).astype(jnp.float32)
    return (mask.astype(jnp.float32) / counts[:, None]).astype(dtype)


def _snn_pool_kernel(x_ref, s_ref, mem_ref, spike_ref, mem_out_ref, *,
                     thresh, decay):
    # x_ref:   (B, H_in*W_in)
    # s_ref:   (H_in*W_in, H_out*W_out)  -- grid invariant (stays resident)
    # mem_ref: (B, H_out*W_out)
    pooled = jnp.dot(x_ref[...], s_ref[...],
                     preferred_element_type=jnp.float32)
    mem = mem_ref[...].astype(jnp.float32) + pooled
    spike = (mem > thresh).astype(jnp.float32)
    new_mem = mem * decay * (1.0 - spike)
    spike_ref[...] = spike.astype(spike_ref.dtype)
    mem_out_ref[...] = new_mem.astype(mem_out_ref.dtype)


def snn_adaptive_pooling(x, dimension, mem=None, *, thresh=THRESH, decay=DECAY):
    """Forward of SNN_Adaptivepooling. Returns (spike, new_mem)."""
    if isinstance(dimension, int):
        dimension = (dimension, dimension)
    N, C, H_in, W_in = x.shape
    H_out, W_out = dimension

    nc = N * C
    k_in = H_in * W_in
    k_out = H_out * W_out
    dtype = x.dtype
    itemsize = jnp.dtype(dtype).itemsize

    # --- block size along the collapsed (N*C) axis --------------------------
    # Keep the double-buffered working set comfortably under the default
    # scoped-VMEM limit on every generation (incl. v7x's 64 MiB physical).
    row_bytes = (k_in + 3 * k_out) * itemsize
    target_block_bytes = 2 << 20
    b = max(8, (target_block_bytes // max(row_bytes, 1)) // 8 * 8)
    b = min(b, _round_up(nc, 8))
    # Prefer >= 2 grid steps (megacore / v7x dual-TC sharding) when there is work.
    if b >= _round_up(nc, 8) and nc > 8:
        b = _round_up(pl.cdiv(nc, 2), 8)
    nc_pad = _round_up(nc, b)
    grid = (nc_pad // b,)

    # --- fused averaging matrix S = kron(R, C)^T -----------------------------
    s_dtype = dtype if dtype == jnp.bfloat16 else jnp.float32
    R = _adaptive_avg_weights(H_in, H_out, jnp.float32)    # (H_out, H_in)
    Cw = _adaptive_avg_weights(W_in, W_out, jnp.float32)   # (W_out, W_in)
    S = jnp.kron(R, Cw).T.astype(s_dtype)                  # (k_in, k_out)

    # --- flatten + pad the NC axis -------------------------------------------
    x_flat = x.reshape(nc, k_in)
    if mem is None:
        mem_flat = jnp.zeros((nc, k_out), dtype=dtype)
    else:
        mem_flat = mem.reshape(nc, k_out).astype(dtype)
    if nc_pad != nc:
        pad = nc_pad - nc
        x_flat = jnp.pad(x_flat, ((0, pad), (0, 0)))
        mem_flat = jnp.pad(mem_flat, ((0, pad), (0, 0)))

    vmem_need = (2 * b * (k_in + 3 * k_out) * itemsize
                 + k_in * k_out * jnp.dtype(s_dtype).itemsize + (2 << 20))
    compiler_params = pltpu.CompilerParams(
        dimension_semantics=("parallel",),
        vmem_limit_bytes=int(min(max(vmem_need, 16 << 20), 48 << 20)))

    kernel = functools.partial(_snn_pool_kernel, thresh=thresh, decay=decay)
    spike_flat, mem_out_flat = pl.pallas_call(
        kernel,
        out_shape=(jax.ShapeDtypeStruct((nc_pad, k_out), dtype),
                   jax.ShapeDtypeStruct((nc_pad, k_out), dtype)),
        grid=grid,
        in_specs=[
            pl.BlockSpec((b, k_in), lambda i: (i, 0)),
            pl.BlockSpec((k_in, k_out), lambda i: (0, 0)),   # resident constant
            pl.BlockSpec((b, k_out), lambda i: (i, 0)),
        ],
        out_specs=(pl.BlockSpec((b, k_out), lambda i: (i, 0)),
                   pl.BlockSpec((b, k_out), lambda i: (i, 0))),
        compiler_params=compiler_params,
    )(x_flat, S, mem_flat)

    spike = spike_flat[:nc].reshape(N, C, H_out, W_out)
    new_mem = mem_out_flat[:nc].reshape(N, C, H_out, W_out)
    return spike, new_mem


# ----------------------------- pure-JAX reference -----------------------------
def _adaptive_avg_pool_ref(x, dimension):
    H_out, W_out = dimension
    _, _, H_in, W_in = x.shape
    rows = []
    for i in range(H_out):
        hs = (i * H_in) // H_out
        he = ((i + 1) * H_in + H_out - 1) // H_out
        cols = []
        for j in range(W_out):
            ws = (j * W_in) // W_out
            we = ((j + 1) * W_in + W_out - 1) // W_out
            cols.append(jnp.mean(x[:, :, hs:he, ws:we], axis=(2, 3)))
        rows.append(jnp.stack(cols, axis=-1))
    return jnp.stack(rows, axis=-2)


def _reference_forward(x, dimension, mem=None, thresh=THRESH, decay=DECAY):
    pooled = _adaptive_avg_pool_ref(x.astype(jnp.float32), dimension)
    mem0 = jnp.zeros_like(pooled) if mem is None else mem.astype(jnp.float32)
    m = mem0 + pooled
    spike = (m > thresh).astype(jnp.float32)
    new_mem = m * decay * (1.0 - spike)
    return spike, new_mem, m


# TODO(synk): the surrogate-gradient backward (ActFun_changeable.backward) is a
# custom autograd rule and is not part of this forward-only kernel.

if __name__ == "__main__":
    key = jax.random.PRNGKey(0)
    x = jax.random.normal(key, (2, 4, 16, 16), dtype=jnp.float32)
    dimension = (6, 5)   # AdaptiveAvgPool2d output size (non-divisible windows)

    spike, new_mem = snn_adaptive_pooling(x, dimension)
    spike = jax.block_until_ready(spike)
    new_mem = jax.block_until_ready(new_mem)

    ref_spike, ref_mem, ref_pre = _reference_forward(x, dimension)

    assert spike.shape == (2, 4, 6, 5), spike.shape
    assert new_mem.shape == (2, 4, 6, 5), new_mem.shape
    # Compare away from the exact threshold boundary (fp summation-order slack).
    safe = jnp.abs(ref_pre - THRESH) > 1e-4
    assert bool(jnp.all(jnp.where(safe, spike == ref_spike, True))), "spike mismatch"
    err = jnp.where(safe & (spike == ref_spike), jnp.abs(new_mem - ref_mem), 0.0)
    assert float(jnp.max(err)) < 1e-5, float(jnp.max(err))

    print("KERNEL_OK")
</pallas_src>

<mosaic_0001>
module attributes {stable_mosaic.version = 11 : i64} {
  func.func @_snn_pool_kernel(%arg0: i32, %arg1: memref<8x256xf32, #tpu.memory_space<vmem>>, %arg2: memref<256x30xf32, #tpu.memory_space<vmem>>, %arg3: memref<8x30xf32, #tpu.memory_space<vmem>>, %arg4: memref<8x30xf32, #tpu.memory_space<vmem>>, %arg5: memref<8x30xf32, #tpu.memory_space<vmem>>) attributes {dimension_semantics = [#tpu.dimension_semantics<parallel>], iteration_bounds = array<i64: 1>, scalar_prefetch = 0 : i64, scratch_operands = 0 : i64, tpu.core_type = #tpu.core_type<tc>, window_params = [{transform_indices = @transform_0, window_bounds = array<i64: 8, 256>}, {pipeline_mode = #tpu.pipeline_mode<synchronous>, transform_indices = @transform_1, window_bounds = array<i64: 256, 30>}, {transform_indices = @transform_2, window_bounds = array<i64: 8, 30>}, {transform_indices = @transform_3, window_bounds = array<i64: 8, 30>}, {transform_indices = @transform_4, window_bounds = array<i64: 8, 30>}]} {
    %c0 = arith.constant 0 : index
    %c0_0 = arith.constant 0 : index
    %0 = vector.load %arg1[%c0, %c0_0] : memref<8x256xf32, #tpu.memory_space<vmem>>, vector<8x256xf32>
    %c0_1 = arith.constant 0 : index
    %c0_2 = arith.constant 0 : index
    %1 = vector.load %arg2[%c0_1, %c0_2] : memref<256x30xf32, #tpu.memory_space<vmem>>, vector<256x30xf32>
    %cst = arith.constant dense<0.000000e+00> : vector<8x30xf32>
    %2 = tpu.matmul %0, %1, %cst {dimension_numbers = #tpu.dot_dimension_numbers<[1], [0], [0], [1], [0, 0, 1, 1], [], []>} : vector<8x256xf32>, vector<256x30xf32>, vector<8x30xf32> -> vector<8x30xf32>
    %c0_3 = arith.constant 0 : index
    %c0_4 = arith.constant 0 : index
    %3 = vector.load %arg3[%c0_3, %c0_4] : memref<8x30xf32, #tpu.memory_space<vmem>>, vector<8x30xf32>
    %4 = arith.addf %3, %2 : vector<8x30xf32>
    %cst_5 = arith.constant 3.000000e-01 : f32
    %5 = vector.broadcast %cst_5 : f32 to vector<8x30xf32>
    %6 = arith.cmpf ogt, %4, %5 : vector<8x30xf32>
    %7 = arith.extui %6 : vector<8x30xi1> to vector<8x30xi32>
    %8 = arith.sitofp %7 : vector<8x30xi32> to vector<8x30xf32>
    %cst_6 = arith.constant 2.000000e-01 : f32
    %9 = vector.broadcast %cst_6 : f32 to vector<8x30xf32>
    %10 = arith.mulf %4, %9 : vector<8x30xf32>
    %cst_7 = arith.constant 1.000000e+00 : f32
    %11 = vector.broadcast %cst_7 : f32 to vector<8x30xf32>
    %12 = arith.subf %11, %8 : vector<8x30xf32>
    %13 = arith.mulf %10, %12 : vector<8x30xf32>
    %c0_8 = arith.constant 0 : index
    %c0_9 = arith.constant 0 : index
    %14 = vector.load %arg4[%c0_8, %c0_9] : memref<8x30xf32, #tpu.memory_space<vmem>>, vector<8x30xf32>
    tpu.vector_store %arg4[%c0_8, %c0_9], %8 {strides = array<i32>} : memref<8x30xf32, #tpu.memory_space<vmem>>, vector<8x30xf32>,
    %c0_10 = arith.constant 0 : index
    %c0_11 = arith.constant 0 : index
    %15 = vector.load %arg5[%c0_10, %c0_11] : memref<8x30xf32, #tpu.memory_space<vmem>>, vector<8x30xf32>
    tpu.vector_store %arg5[%c0_10, %c0_11], %13 {strides = array<i32>} : memref<8x30xf32, #tpu.memory_space<vmem>>, vector<8x30xf32>,
    return
  }
  func.func @transform_0(%arg0: i32) -> (i32, i32) {
    %c0_i32 = arith.constant 0 : i32
    %c0_i32_0 = arith.constant 0 : i32
    return %arg0, %c0_i32 : i32, i32
  }
  func.func @transform_1(%arg0: i32) -> (i32, i32) {
    %c0_i32 = arith.constant 0 : i32
    %c0_i32_0 = arith.constant 0 : i32
    %c0_i32_1 = arith.constant 0 : i32
    return %c0_i32, %c0_i32_0 : i32, i32
  }
  func.func @transform_2(%arg0: i32) -> (i32, i32) {
    %c0_i32 = arith.constant 0 : i32
    %c0_i32_0 = arith.constant 0 : i32
    return %arg0, %c0_i32 : i32, i32
  }
  func.func @transform_3(%arg0: i32) -> (i32, i32) {
    %c0_i32 = arith.constant 0 : i32
    %c0_i32_0 = arith.constant 0 : i32
    return %arg0, %c0_i32 : i32, i32
  }
  func.func @transform_4(%arg0: i32) -> (i32, i32) {
    %c0_i32 = arith.constant 0 : i32
    %c0_i32_0 = arith.constant 0 : i32
    return %arg0, %c0_i32 : i32, i32
  }
}

</mosaic_0001>

<llo_original>
// kernel: tpu_custom_call.1
$region0: #{tpu_custom_call.1}
  #allocation0 [shape = 'u32[]', space=smem, size = 0x4, offset = 0x4, fixed_abs, tag = 'smem constant byte address 0x4 - core index']
  #allocation1 [shape = 'u32[144,128]{1,0:T(1,128)}', space=vmem, size = 0x12000, scoped, tag = 'internal scratch']
  %s0 = inlined_call_operand.vmem [shape: f32[8,256], index: 0, kind: input, shape index: {}]
  %s1 = inlined_call_operand.vmem [shape: f32[256,30], index: 1, kind: input, shape index: {}]
  %s2 = inlined_call_operand.vmem [shape: f32[8,30], index: 2, kind: input, shape index: {}]
  %s3 = inlined_call_operand.hbm [shape: f32[8,30], index: 3, kind: output, shape index: {0}]
  %s4 = inlined_call_operand.hbm [shape: f32[8,30], index: 4, kind: output, shape index: {1}]
  %5 = xla_tuple %s3, %s4
  %s6 = sld [smem:[#allocation0]]
  $region30: #{tpu_custom_call.1} parent=0
    _
  %s8 = ssub.s32 1, %s6
  %s9 = scalar_select 0, %s8, %s6
  $region1: #{tpu_custom_call.1} parent=0
    #allocation2 [shape = 'u8[4096]{0}', space=vmem, size = 0x1000, scoped, tag = 'output window, operand 0, single buffered']
    #allocation3 [shape = 's32[1]{0}', space=sflag, size = 0x4, scoped, tag = 'scoped memory for tpu_custom_call.1']
    #allocation4 [shape = 'u8[4096]{0}', space=vmem, size = 0x1000, scoped, tag = 'output window, operand 1, single buffered']
    #allocation5 [shape = 's32[1]{0}', space=sflag, size = 0x4, scoped, tag = 'scoped memory for tpu_custom_call.1']
    %10 = vsyncpa [#allocation3], 0
    %11 = vsyncpa [#allocation5], 0
    // Predicated region
    $region2: #{tpu_custom_call.1} parent=1 // pred_check
      _
    $region3: #{tpu_custom_call.1} parent=1 // pred_check_branch
      %13 = sbr.rel (0) target = $region5
    $region4: #{tpu_custom_call.1} parent=1 // pred_region
      _
    $region5: #{tpu_custom_call.1} parent=1 // pred_fallthru
      _
    // Predicated region
    $region6: #{tpu_custom_call.1} parent=1 // pred_check
      _
    $region7: #{tpu_custom_call.1} parent=1 // pred_check_branch
      %15 = sbr.rel (0) target = $region9
    $region8: #{tpu_custom_call.1} parent=1 // pred_region
      _
    $region9: #{tpu_custom_call.1} parent=1 // pred_fallthru
      _
    // Predicated region
    $region10: #{tpu_custom_call.1} parent=1 // pred_check
      _
    $region11: #{tpu_custom_call.1} parent=1 // pred_check_branch
      %17 = sbr.rel (0) target = $region13
    $region12: #{tpu_custom_call.1} parent=1 // pred_region
      _
    $region13: #{tpu_custom_call.1} parent=1 // pred_fallthru
      _
    %v18 = vld [vmem:[%s0] sm:$0xff]
    %v19 = vld [vmem:[%s0 + $0x8] sm:$0xff]
    %v20 = vld [vmem:[%s1] sm:$0xff]
    %v21 = vld [vmem:[%s1 + $0x8] sm:$0xff]
    %v22 = vld [vmem:[%s1 + $0x10] sm:$0xff]
    %v23 = vld [vmem:[%s1 + $0x18] sm:$0xff]
    %v24 = vld [vmem:[%s1 + $0x20] sm:$0xff]
    %v25 = vld [vmem:[%s1 + $0x28] sm:$0xff]
    %v26 = vld [vmem:[%s1 + $0x30] sm:$0xff]
    %v27 = vld [vmem:[%s1 + $0x38] sm:$0xff]
    %v28 = vld [vmem:[%s1 + $0x40] sm:$0xff]
    %v29 = vld [vmem:[%s1 + $0x48] sm:$0xff]
    %v30 = vld [vmem:[%s1 + $0x50] sm:$0xff]
    %v31 = vld [vmem:[%s1 + $0x58] sm:$0xff]
    %v32 = vld [vmem:[%s1 + $0x60] sm:$0xff]
    %v33 = vld [vmem:[%s1 + $0x68] sm:$0xff]
    %v34 = vld [vmem:[%s1 + $0x70] sm:$0xff]
    %v35 = vld [vmem:[%s1 + $0x78] sm:$0xff]
    %v36 = vld [vmem:[%s1 + $0x80] sm:$0xff]
    %v37 = vld [vmem:[%s1 + $0x88] sm:$0xff]
    %v38 = vld [vmem:[%s1 + $0x90] sm:$0xff]
    %v39 = vld [vmem:[%s1 + $0x98] sm:$0xff]
    %v40 = vld [vmem:[%s1 + $0xa0] sm:$0xff]
    %v41 = vld [vmem:[%s1 + $0xa8] sm:$0xff]
    %v42 = vld [vmem:[%s1 + $0xb0] sm:$0xff]
    %v43 = vld [vmem:[%s1 + $0xb8] sm:$0xff]
    %v44 = vld [vmem:[%s1 + $0xc0] sm:$0xff]
    %v45 = vld [vmem:[%s1 + $0xc8] sm:$0xff]
    %v46 = vld [vmem:[%s1 + $0xd0] sm:$0xff]
    %v47 = vld [vmem:[%s1 + $0xd8] sm:$0xff]
    %v48 = vld [vmem:[%s1 + $0xe0] sm:$0xff]
    %v49 = vld [vmem:[%s1 + $0xe8] sm:$0xff]
    %v50 = vld [vmem:[%s1 + $0xf0] sm:$0xff]
    %v51 = vld [vmem:[%s1 + $0xf8] sm:$0xff]
    %52 = vmatprep.subr.mxu0 0.0
    %53 = vmatpush1.msra.mxu0 %v35
    %54 = vmatprep.subr.mxu0 0.0
    %55 = vmatpush1.msra.mxu0 %v34
    %56 = vmatprep.subr.mxu0 0.0
    %57 = vmatpush1.msra.mxu0 %v33
    %58 = vmatprep.subr.mxu0 0.0
    %59 = vmatpush1.msra.mxu0 %v32
    %60 = vmatprep.subr.mxu0 0.0
    %61 = vmatpush1.msra.mxu0 %v31
    %62 = vmatprep.subr.mxu0 0.0
    %63 = vmatpush1.msra.mxu0 %v30
    %64 = vmatprep.subr.mxu0 0.0
    %65 = vmatpush1.msra.mxu0 %v29
    %66 = vmatprep.subr.mxu0 0.0
    %67 = vmatpush1.msra.mxu0 %v28
    %68 = vmatprep.subr.mxu0 0.0
    %69 = vmatpush1.msra.mxu0 %v27
    %70 = vmatprep.subr.mxu0 0.0
    %71 = vmatpush1.msra.mxu0 %v26
    %72 = vmatprep.subr.mxu0 0.0
    %73 = vmatpush1.msra.mxu0 %v25
    %74 = vmatprep.subr.mxu0 0.0
    %75 = vmatpush1.msra.mxu0 %v24
    %76 = vmatprep.subr.mxu0 0.0
    %77 = vmatpush1.msra.mxu0 %v23
    %78 = vmatprep.subr.mxu0 0.0
    %79 = vmatpush1.msra.mxu0 %v22
    %80 = vmatprep.subr.mxu0 0.0
    %81 = vmatpush1.msra.mxu0 %v21
    %82 = vmatprep.subr.mxu0 0.0
    %83 = vmatpush1.msra.mxu0 %v20
    %84 = vmatprep.subr.mxu0 0.0
    %85 = vmatpush2.msra.mxu0 %v51
    %86 = vmatprep.subr.mxu0 0.0
    %87 = vmatpush2.msra.mxu0 %v50
    %88 = vmatprep.subr.mxu0 0.0
    %89 = vmatpush2.msra.mxu0 %v49
    %90 = vmatprep.subr.mxu0 0.0
    %91 = vmatpush2.msra.mxu0 %v48
    %92 = vmatprep.subr.mxu0 0.0
    %93 = vmatpush2.msra.mxu0 %v47
    %94 = vmatprep.subr.mxu0 0.0
    %95 = vmatpush2.msra.mxu0 %v46
    %96 = vmatprep.subr.mxu0 0.0
    %97 = vmatpush2.msra.mxu0 %v45
    %98 = vmatprep.subr.mxu0 0.0
    %99 = vmatpush2.msra.mxu0 %v44
    %100 = vmatprep.subr.mxu0 0.0
    %101 = vmatpush2.msra.mxu0 %v43
    %102 = vmatprep.subr.mxu0 0.0
    %103 = vmatpush2.msra.mxu0 %v42
    %104 = vmatprep.subr.mxu0 0.0
    %105 = vmatpush2.msra.mxu0 %v41
    %106 = vmatprep.subr.mxu0 0.0
    %107 = vmatpush2.msra.mxu0 %v40
    %108 = vmatprep.subr.mxu0 0.0
    %109 = vmatpush2.msra.mxu0 %v39
    %110 = vmatprep.subr.mxu0 0.0
    %111 = vmatpush2.msra.mxu0 %v38
    %112 = vmatprep.subr.mxu0 0.0
    %113 = vmatpush2.msra.mxu0 %v37
    %114 = vmatprep.subr.mxu0 0.0
    %115 = vmatpush2.msra.mxu0 %v36
    %116 = vmatprep.mubr.f32.mxu0 %v19
    %117 = vmatmul.mubr.f32.gmra.mxu0 %v18
    %v118 = vpop.f32.mrf.mxu0
    %v119 = vadd.f32 0.0, %v118
    %v120 = vpop.f32.mrf.mxu0
    %121 = vdwg.mxu0
    %v122 = vld [vmem:[%s2] sm:$0xff]
    %v123 = vadd.f32 %v122, %v119
    %vm124 = vcmp.gt.f32.partialorder %v123, 0.3
    %v125 = vsel %vm124, 1, 0
    %v126 = vcvt.s32.f32 %v125
    %v127 = vmul.f32 %v123, 0.2
    %v128 = vsub.f32 1.0, %v126
    %v129 = vmul.f32 %v127, %v128
    %vm130 = vcmask 244736
    %131 = vst.msk [vmem:[#allocation2] sm:$0xff] %vm130, %v126
    %132 = vst.msk [vmem:[#allocation4] sm:$0xff] %vm130, %v129
    // Predicated region
    $region14: #{tpu_custom_call.1} parent=1 // pred_check
      _
    $region15: #{tpu_custom_call.1} parent=1 // pred_check_branch
      %134 = sbr.rel (0) target = $region17
    $region16: #{tpu_custom_call.1} parent=1 // pred_region
      %s136 = ssub.s32 128, 128
      %137 = vsyncadd [#allocation3], %s136
      %s139 = sshll.u32 [#allocation2], 4
      %s140 = int_to_ptr.vmem [resolvable:$true] %s139
      %142 = dma.vmem_to_hbm [thread:$0]  %s140, 128, %s3, [#allocation3]
    $region17: #{tpu_custom_call.1} parent=1 // pred_fallthru
      _
    // Predicated region
    $region18: #{tpu_custom_call.1} parent=1 // pred_check
      _
    $region19: #{tpu_custom_call.1} parent=1 // pred_check_branch
      %144 = sbr.rel (0) target = $region21
    $region20: #{tpu_custom_call.1} parent=1 // pred_region
      %s146 = ssub.s32 128, 128
      %147 = vsyncadd [#allocation5], %s146
      %s149 = sshll.u32 [#allocation4], 4
      %s150 = int_to_ptr.vmem [resolvable:$true] %s149
      %152 = dma.vmem_to_hbm [thread:$0]  %s150, 128, %s4, [#allocation5]
    $region21: #{tpu_custom_call.1} parent=1 // pred_fallthru
      _
    // Predicated region
    $region22: #{tpu_custom_call.1} parent=1 // pred_check
      _
    $region23: #{tpu_custom_call.1} parent=1 // pred_check_branch
      %154 = sbr.rel (0) target = $region25
    $region24: #{tpu_custom_call.1} parent=1 // pred_region
      %155 = dma.done [#allocation3], 128
    $region25: #{tpu_custom_call.1} parent=1 // pred_fallthru
      _
    // Predicated region
    $region26: #{tpu_custom_call.1} parent=1 // pred_check
      _
    $region27: #{tpu_custom_call.1} parent=1 // pred_check_branch
      %157 = sbr.rel (0) target = $region29
    $region28: #{tpu_custom_call.1} parent=1 // pred_region
      %158 = dma.done [#allocation5], 128
    $region29: #{tpu_custom_call.1} parent=1 // pred_fallthru
      _
    %159 = vsyncpa [#allocation3], 1
    %160 = vsyncpa [#allocation5], 1

</llo_original>
